<compile_context>
chip_gen: v6e
topology: v6e:2x2x1
jax: 0.10.0
libtpu: 0.0.40
codegen_flags: <defaults>
</compile_context>

<pallas_src>
import functools

import jax
import jax.numpy as jnp
from jax.experimental import pallas as pl
from jax.experimental.pallas import tpu as pltpu

MARGIN = 1.0
_OUT_LANES = 128  # lane-dense per-slab output block


def _round_up(a, b):
    return (a + b - 1) // b * b


def _vmem_capacity_bytes():
    try:
        return int(pltpu.get_tpu_info().vmem_capacity_bytes)
    except Exception:
        return 64 * 1024 * 1024  # conservative: v7x physical VMEM per TC


def _hinge_kernel(x_ref, t_ref, o_ref, acc_ref, *,
                  m_rows, tile_rows, acc_rows, needs_row_mask):
    p = pl.program_id(0)   # slab axis (CORE_PARALLEL when sharded over 2 TCs)
    k = pl.program_id(1)   # reduction axis over row tiles within the slab
    nk = pl.num_programs(1)

    @pl.when(k == 0)
    def _init():
        acc_ref[...] = jnp.zeros_like(acc_ref)

    # Native-dtype HBM reads, f32 compute (matches an f32 PyTorch reference).
    x = x_ref[...].astype(jnp.float32)
    t = t_ref[...].astype(jnp.float32)
    h = jnp.maximum(MARGIN - x * t, 0.0)

    if needs_row_mask:
        # Mask rows past the logical end (ragged tail tile / clamped duplicate
        # tiles).  Column iota + broadcasting keeps the per-step VALU cost low.
        tile_start = (p * nk + k) * tile_rows
        row_ids = jax.lax.broadcasted_iota(jnp.int32, (tile_rows, 1), 0)
        h = jnp.where(row_ids + tile_start < m_rows, h, 0.0)

    # Cheap per-step partial reduce into the small (acc_rows, L) accumulator:
    # strided vreg adds on the VPU (free under the HBM-bound roofline).  The
    # expensive cross-sublane/lane collapse happens once per slab below.
    acc_ref[...] += h.reshape(tile_rows // acc_rows, acc_rows, h.shape[-1]).sum(axis=0)

    @pl.when(k == nk - 1)
    def _finalize():
        # Single full reduce per slab, broadcast into a lane-dense 128-wide
        # output block (unmasked vector store).
        o_ref[...] = jnp.full((1, _OUT_LANES), jnp.sum(acc_ref[...]), jnp.float32)


def hinge_loss(x, t, *, num_cores=1, max_tile_rows=None):
    """Pallas implementation of HingeLoss.forward(input, target) -> scalar mean.

    num_cores: TensorCores to shard the slab axis across (2 on v7x, 1 on
      v5e/v6e).  # TODO(synk): auto-detect per-chip TC count once exposed.
    """
    assert x.shape == t.shape
    total = int(x.size)
    assert total > 0

    # ---- Flatten to a lane-dense (M, L) slab (free reshape of contiguous data).
    x_flat = x.reshape(-1)
    t_flat = t.reshape(-1)
    lanes = None
    for cand in (1024, 512, 256, 128):
        if total % cand == 0:
            lanes = cand
            break
    if lanes is None:
        # Pad the tail with (x=2, t=1): margin - 2*1 < 0 -> padded elements
        # contribute exactly 0, so no in-kernel element mask is needed.
        lanes = 128
        pad = (-total) % lanes
        x_flat = jnp.pad(x_flat, (0, pad), constant_values=2.0)
        t_flat = jnp.pad(t_flat, (0, pad), constant_values=1.0)
    m_rows = x_flat.size // lanes
    x2 = x_flat.reshape(m_rows, lanes)
    t2 = t_flat.reshape(m_rows, lanes)

    itemsize_x = jnp.dtype(x2.dtype).itemsize
    itemsize_t = jnp.dtype(t2.dtype).itemsize
    # Sublane packing multiple for the second-to-last block dim (8 f32, 16 bf16).
    sub = max(8, 32 // itemsize_x, 32 // itemsize_t)

    # ---- Generation-aware VMEM budget (scoped limit is set explicitly below).
    vmem_cap = _vmem_capacity_bytes()
    budget = min(24 * 1024 * 1024, vmem_cap // 3)
    acc_bytes = 8 * lanes * 4
    # Per row of the tile: 2-deep pipeline of both inputs + ~3 full-tile f32
    # elementwise temporaries of headroom.
    bytes_per_row = lanes * (2 * (itemsize_x + itemsize_t) + 3 * 4)
    max_rows = max(sub, ((budget - acc_bytes) // bytes_per_row) // sub * sub)
    if max_tile_rows is not None:
        max_rows = min(max_rows, max(sub, (max_tile_rows // sub) * sub))

    # ---- Grid / tile selection.
    num_tiles0 = 1 if m_rows <= max_rows else pl.cdiv(m_rows, max_rows)
    n_slabs = num_cores if (num_cores > 1 and num_tiles0 >= num_cores) else 1
    if num_tiles0 == 1:
        tile_rows = m_rows                   # single full-height block
        num_tiles = 1
    else:
        num_tiles0 = _round_up(num_tiles0, n_slabs)
        tile_rows = min(max_rows, _round_up(pl.cdiv(m_rows, num_tiles0), sub))
        num_tiles = _round_up(pl.cdiv(m_rows, tile_rows), n_slabs)
    k_steps = num_tiles // n_slabs
    needs_row_mask = (num_tiles * tile_rows != m_rows)
    last_tile = pl.cdiv(m_rows, tile_rows) - 1   # last tile containing valid rows

    def in_map(p, k):
        tile = p * k_steps + k
        if num_tiles > last_tile + 1:
            # Safety net: clamp fully out-of-range duplicated tail tiles
            # (their rows are masked to 0 inside the kernel).
            tile = jnp.minimum(tile, last_tile)
        return (tile, 0)

    acc_rows = 8 if tile_rows % 8 == 0 else tile_rows

    vmem_limit = int(min(vmem_cap * 3 // 4, budget + (8 << 20)))
    vmem_limit = max(vmem_limit, 16 << 20)

    if n_slabs > 1:
        dims = (pltpu.CORE_PARALLEL, pltpu.ARBITRARY)
    else:
        dims = ("arbitrary", "arbitrary")

    kernel = functools.partial(
        _hinge_kernel, m_rows=m_rows, tile_rows=tile_rows,
        acc_rows=acc_rows, needs_row_mask=needs_row_mask)

    out = pl.pallas_call(
        kernel,
        out_shape=jax.ShapeDtypeStruct((1, n_slabs * _OUT_LANES), jnp.float32),
        grid_spec=pltpu.PrefetchScalarGridSpec(
            num_scalar_prefetch=0,
            grid=(n_slabs, k_steps),
            in_specs=[
                pl.BlockSpec((tile_rows, lanes), in_map),
                pl.BlockSpec((tile_rows, lanes), in_map),
            ],
            out_specs=pl.BlockSpec((1, _OUT_LANES), lambda p, k: (0, p)),
            scratch_shapes=[pltpu.VMEM((acc_rows, lanes), jnp.float32)],
        ),
        compiler_params=pltpu.CompilerParams(
            dimension_semantics=dims,
            vmem_limit_bytes=vmem_limit,
        ),
    )(x2, t2)

    partials = out.reshape(n_slabs, _OUT_LANES)[:, 0]
    return jnp.sum(partials) / total


def hinge_loss_ref(x, t):
    return jnp.mean(jnp.maximum(
        MARGIN - x.astype(jnp.float32) * t.astype(jnp.float32), 0.0))


if __name__ == "__main__":
    key = jax.random.PRNGKey(0)
    k1, k2, k3, k4, k5, k6 = jax.random.split(key, 6)

    # Case 1: typical hinge head, trailing dim NOT a multiple of 128
    # (exercises the flatten + sentinel-pad path and a single full-height tile).
    x1 = jax.random.normal(k1, (16, 100), dtype=jnp.float32)
    t1 = jnp.where(jax.random.bernoulli(k2, 0.5, (16, 100)), 1.0, -1.0).astype(jnp.float32)
    l1 = hinge_loss(x1, t1)
    jax.block_until_ready(l1)
    r1 = hinge_loss_ref(x1, t1)
    assert jnp.allclose(l1, r1, rtol=1e-5, atol=1e-6), (l1, r1)

    # Case 2: ragged multi-tile streaming reduce with forced small tiles
    # (exercises the cdiv grid, masked tail tile, small accumulator).
    x2 = jax.random.normal(k3, (50, 128), dtype=jnp.float32)
    t2 = jnp.where(jax.random.bernoulli(k4, 0.5, (50, 128)), 1.0, -1.0).astype(jnp.float32)
    l2 = hinge_loss(x2, t2, max_tile_rows=8)
    jax.block_until_ready(l2)
    r2 = hinge_loss_ref(x2, t2)
    assert jnp.allclose(l2, r2, rtol=1e-5, atol=1e-6), (l2, r2)

    # Case 3: bf16 inputs — native-dtype HBM reads, f32 hinge inside the kernel.
    x3 = jax.random.normal(k5, (24, 128), dtype=jnp.bfloat16)
    t3 = jnp.where(jax.random.bernoulli(k6, 0.5, (24, 128)), 1.0, -1.0).astype(jnp.bfloat16)
    l3 = hinge_loss(x3, t3)
    jax.block_until_ready(l3)
    r3 = hinge_loss_ref(x3, t3)
    assert jnp.allclose(l3, r3, rtol=1e-4, atol=1e-5), (l3, r3)

    print("KERNEL_OK")
</pallas_src>

<mosaic_0001>
module attributes {stable_mosaic.version = 11 : i64} {
  func.func @_hinge_kernel(%arg0: i32, %arg1: i32, %arg2: memref<13x128xf32, #tpu.memory_space<vmem>>, %arg3: memref<13x128xf32, #tpu.memory_space<vmem>>, %arg4: memref<1x128xf32, #tpu.memory_space<vmem>>, %arg5: memref<13x128xf32, #tpu.memory_space<vmem>>) attributes {dimension_semantics = [#tpu.dimension_semantics<arbitrary>, #tpu.dimension_semantics<arbitrary>], iteration_bounds = array<i64: 1, 1>, scalar_prefetch = 0 : i64, scratch_operands = 1 : i64, tpu.core_type = #tpu.core_type<tc>, window_params = [{transform_indices = @transform_0, window_bounds = array<i64: 13, 128>}, {transform_indices = @transform_1, window_bounds = array<i64: 13, 128>}, {transform_indices = @transform_2, window_bounds = array<i64: 1, 128>}]} {
    %c0_i32 = arith.constant 0 : i32
    %0 = arith.cmpi eq, %arg1, %c0_i32 : i32
    %1 = arith.extui %0 : i1 to i32
    %c0_i32_0 = arith.constant 0 : i32
    %2 = arith.cmpi ne, %1, %c0_i32_0 : i32
    scf.if %2 {
      %cst_12 = arith.constant 0.000000e+00 : f32
      %18 = vector.broadcast %cst_12 : f32 to vector<13x128xf32>
      %c0_13 = arith.constant 0 : index
      %c0_14 = arith.constant 0 : index
      %19 = vector.load %arg5[%c0_13, %c0_14] : memref<13x128xf32, #tpu.memory_space<vmem>>, vector<13x128xf32>
      tpu.vector_store %arg5[%c0_13, %c0_14], %18 {strides = array<i32>} : memref<13x128xf32, #tpu.memory_space<vmem>>, vector<13x128xf32>,
    } else {
    }
    %c0 = arith.constant 0 : index
    %c0_1 = arith.constant 0 : index
    %3 = vector.load %arg2[%c0, %c0_1] : memref<13x128xf32, #tpu.memory_space<vmem>>, vector<13x128xf32>
    %c0_2 = arith.constant 0 : index
    %c0_3 = arith.constant 0 : index
    %4 = vector.load %arg3[%c0_2, %c0_3] : memref<13x128xf32, #tpu.memory_space<vmem>>, vector<13x128xf32>
    %5 = arith.mulf %3, %4 : vector<13x128xf32>
    %cst = arith.constant 1.000000e+00 : f32
    %6 = vector.broadcast %cst : f32 to vector<13x128xf32>
    %7 = arith.subf %6, %5 : vector<13x128xf32>
    %cst_4 = arith.constant 0.000000e+00 : f32
    %8 = vector.broadcast %cst_4 : f32 to vector<13x128xf32>
    %9 = arith.maximumf %7, %8 : vector<13x128xf32>
    %c0_5 = arith.constant 0 : index
    %c0_6 = arith.constant 0 : index
    %10 = vector.load %arg5[%c0_5, %c0_6] : memref<13x128xf32, #tpu.memory_space<vmem>>, vector<13x128xf32>
    %11 = vector.shape_cast %9 : vector<13x128xf32> to vector<1x13x128xf32>
    %cst_7 = arith.constant dense<0.000000e+00> : vector<13x128xf32>
    %12 = vector.multi_reduction <add>, %11, %cst_7 [0] : vector<1x13x128xf32> to vector<13x128xf32>
    %13 = arith.addf %10, %12 : vector<13x128xf32>
    %c0_8 = arith.constant 0 : index
    %c0_9 = arith.constant 0 : index
    %14 = vector.load %arg5[%c0_8, %c0_9] : memref<13x128xf32, #tpu.memory_space<vmem>>, vector<13x128xf32>
    tpu.vector_store %arg5[%c0_8, %c0_9], %13 {strides = array<i32>} : memref<13x128xf32, #tpu.memory_space<vmem>>, vector<13x128xf32>,
    %c0_i32_10 = arith.constant 0 : i32
    %15 = arith.cmpi eq, %arg1, %c0_i32_10 : i32
    %16 = arith.extui %15 : i1 to i32
    %c0_i32_11 = arith.constant 0 : i32
    %17 = arith.cmpi ne, %16, %c0_i32_11 : i32
    scf.if %17 {
      %c0_12 = arith.constant 0 : index
      %c0_13 = arith.constant 0 : index
      %18 = vector.load %arg5[%c0_12, %c0_13] : memref<13x128xf32, #tpu.memory_space<vmem>>, vector<13x128xf32>
      %19 = vector.shape_cast %18 : vector<13x128xf32> to vector<1x13x128xf32>
      %cst_14 = arith.constant dense<0.000000e+00> : vector<1xf32>
      %20 = vector.multi_reduction <add>, %19, %cst_14 [1, 2] : vector<1x13x128xf32> to vector<1xf32>
      %21 = vector.shape_cast %20 : vector<1xf32> to vector<1x1x1xf32>
      %22 = vector.extract %21[0, 0, 0] : f32 from vector<1x1x1xf32>
      %23 = vector.broadcast %22 : f32 to vector<1x128xf32>
      %c0_15 = arith.constant 0 : index
      %c0_16 = arith.constant 0 : index
      %24 = vector.load %arg4[%c0_15, %c0_16] : memref<1x128xf32, #tpu.memory_space<vmem>>, vector<1x128xf32>
      tpu.vector_store %arg4[%c0_15, %c0_16], %23 {strides = array<i32>} : memref<1x128xf32, #tpu.memory_space<vmem>>, vector<1x128xf32>,
    } else {
    }
    return
  }
  func.func @transform_0(%arg0: i32, %arg1: i32) -> (i32, i32) {
    %c1_i32 = arith.constant 1 : i32
    %0 = arith.muli %arg0, %c1_i32 : i32
    %1 = arith.addi %0, %arg1 : i32
    %c0_i32 = arith.constant 0 : i32
    %c0_i32_0 = arith.constant 0 : i32
    return %1, %c0_i32 : i32, i32
  }
  func.func @transform_1(%arg0: i32, %arg1: i32) -> (i32, i32) {
    %c1_i32 = arith.constant 1 : i32
    %0 = arith.muli %arg0, %c1_i32 : i32
    %1 = arith.addi %0, %arg1 : i32
    %c0_i32 = arith.constant 0 : i32
    %c0_i32_0 = arith.constant 0 : i32
    return %1, %c0_i32 : i32, i32
  }
  func.func @transform_2(%arg0: i32, %arg1: i32) -> (i32, i32) {
    %c0_i32 = arith.constant 0 : i32
    %c0_i32_0 = arith.constant 0 : i32
    return %c0_i32, %arg0 : i32, i32
  }
}

</mosaic_0001>

<llo_original>
// kernel: tpu_custom_call.1
$region0: #{tpu_custom_call.1}
  #allocation0 [shape = 'u32[]', space=smem, size = 0x4, offset = 0x4, fixed_abs, tag = 'smem constant byte address 0x4 - core index']
  #allocation1 [shape = 'u32[144,128]{1,0:T(1,128)}', space=vmem, size = 0x12000, scoped, tag = 'internal scratch']
  #allocation2 [shape = 'f32[13,128]{1,0:T(8,128)}', space=vmem, size = 0x2000, scoped, tag = 'scratch operand']
  %s0 = inlined_call_operand.hbm [shape: f32[13,128], index: 0, kind: input, shape index: {}]
  %s1 = inlined_call_operand.hbm [shape: f32[13,128], index: 1, kind: input, shape index: {}]
  %s2 = inlined_call_operand.hbm [shape: f32[1,128], index: 2, kind: output, shape index: {}]
  %s3 = sld [smem:[#allocation0]]
  $region34: #{tpu_custom_call.1} parent=0
    _
  %s5 = ssub.s32 1, %s3
  %s6 = scalar_select 0, %s5, %s3
  $region1: #{tpu_custom_call.1} parent=0
    #allocation3 [shape = 'u8[8192]{0}', space=vmem, size = 0x2000, scoped, tag = 'input window, operand 0, single buffered']
    #allocation4 [shape = 's32[1]{0}', space=sflag, size = 0x4, scoped, tag = 'scoped memory for tpu_custom_call.1']
    #allocation5 [shape = 's32[1]{0}', space=sflag, size = 0x4, scoped, tag = 'scoped memory for tpu_custom_call.1']
    #allocation6 [shape = 'u8[8192]{0}', space=vmem, size = 0x2000, scoped, tag = 'input window, operand 1, single buffered']
    #allocation7 [shape = 's32[1]{0}', space=sflag, size = 0x4, scoped, tag = 'scoped memory for tpu_custom_call.1']
    #allocation8 [shape = 'u8[512]{0}', space=vmem, size = 0x400, scoped, tag = 'output window, operand 0, single buffered']
    %7 = vsyncpa [#allocation4], 0
    %8 = vsyncpa [#allocation7], 0
    %9 = vsyncpa [#allocation5], 0
    // Predicated region
    $region2: #{tpu_custom_call.1} parent=1 // pred_check
      _
    $region3: #{tpu_custom_call.1} parent=1 // pred_check_branch
      %11 = sbr.rel (0) target = $region5
    $region4: #{tpu_custom_call.1} parent=1 // pred_region
      %s12 = sadd.s32 0, 0
      %s13 = smul.u32 2, %s12
      %s15 = ssub.s32 256, 256
      %16 = vsyncadd [#allocation4], %s15
      %s17 = smul.addr %s13, 128
      %s18 = scalar_lea.hbm %s0, %s17
      %s19 = sshll.u32 [#allocation3], 4
      %s20 = int_to_ptr.vmem [resolvable:$true] %s19
      %25 = dma.hbm_to_vmem [thread:$0]  %s18, 256, %s20, [#allocation4], 128, 128, 8
    $region5: #{tpu_custom_call.1} parent=1 // pred_fallthru
      _
    // Predicated region
    $region6: #{tpu_custom_call.1} parent=1 // pred_check
      _
    $region7: #{tpu_custom_call.1} parent=1 // pred_check_branch
      %27 = sbr.rel (0) target = $region9
    $region8: #{tpu_custom_call.1} parent=1 // pred_region
      %s28 = sadd.s32 0, 0
      %s29 = smul.u32 2, %s28
      %s31 = ssub.s32 256, 256
      %32 = vsyncadd [#allocation7], %s31
      %s33 = smul.addr %s29, 128
      %s34 = scalar_lea.hbm %s1, %s33
      %s35 = sshll.u32 [#allocation6], 4
      %s36 = int_to_ptr.vmem [resolvable:$true] %s35
      %41 = dma.hbm_to_vmem [thread:$0]  %s34, 256, %s36, [#allocation7], 128, 128, 8
    $region9: #{tpu_custom_call.1} parent=1 // pred_fallthru
      _
    // Predicated region
    $region10: #{tpu_custom_call.1} parent=1 // pred_check
      _
    $region11: #{tpu_custom_call.1} parent=1 // pred_check_branch
      %43 = sbr.rel (0) target = $region13
    $region12: #{tpu_custom_call.1} parent=1 // pred_region
      %44 = dma.done [#allocation4], 256
    $region13: #{tpu_custom_call.1} parent=1 // pred_fallthru
      _
    // Predicated region
    $region14: #{tpu_custom_call.1} parent=1 // pred_check
      _
    $region15: #{tpu_custom_call.1} parent=1 // pred_check_branch
      %46 = sbr.rel (0) target = $region17
    $region16: #{tpu_custom_call.1} parent=1 // pred_region
      %47 = dma.done [#allocation7], 256
    $region17: #{tpu_custom_call.1} parent=1 // pred_fallthru
      _
    %s48 = sadd.s32 0, 0
    %s49 = smul.u32 2, %s48
    %s50 = sadd.s32 0, 0
    %s51 = smul.u32 2, %s50
    %p52 = scmp.eq.s32.totalorder 0, 0
    // Predicated region
    $region18: #{tpu_custom_call.1} parent=1 // pred_check
      %p53 = pneg %p52
    $region19: #{tpu_custom_call.1} parent=1 // pred_check_branch
      %55 = sbr.rel (%p53) target = $region21
    $region20: #{tpu_custom_call.1} parent=1 // pred_region
      %56 = vst [vmem:[#allocation2] sm:$0xff] 0.0
      %57 = vst [vmem:[#allocation2 + $0x8] sm:$0x1f] 0.0
    $region21: #{tpu_custom_call.1} parent=1 // pred_fallthru
      _
    %v58 = vld [vmem:[#allocation3] sm:$0xff]
    %v59 = vld [vmem:[#allocation3 + $0x8] sm:$0x1f]
    %v60 = vld [vmem:[#allocation6] sm:$0xff]
    %v61 = vld [vmem:[#allocation6 + $0x8] sm:$0x1f]
    %v62 = vmul.f32 %v58, %v60
    %v63 = vmul.f32 %v59, %v61
    %v64 = vsub.f32 1.0, %v62
    %v65 = vsub.f32 1.0, %v63
    %v66 = vmax.f32 %v64, 0.0
    %v67 = vmax.f32 %v65, 0.0
    %v68 = vld [vmem:[#allocation2] sm:$0xff]
    %v69 = vld [vmem:[#allocation2 + $0x8] sm:$0x1f]
    %v70 = vadd.f32 %v66, 0.0
    %v71 = vadd.f32 %v67, 0.0
    %v72 = vadd.f32 %v68, %v70
    %v73 = vadd.f32 %v69, %v71
    %74 = vst [vmem:[#allocation2] sm:$0xff] %v72
    %75 = vst [vmem:[#allocation2 + $0x8] sm:$0x1f] %v73
    // Predicated region
    $region22: #{tpu_custom_call.1} parent=1 // pred_check
      %p76 = pneg %p52
    $region23: #{tpu_custom_call.1} parent=1 // pred_check_branch
      %78 = sbr.rel (%p76) target = $region25
    $region24: #{tpu_custom_call.1} parent=1 // pred_region
      %v79 = vld [vmem:[#allocation2] sm:$0xff]
      %v80 = vld [vmem:[#allocation2 + $0x8] sm:$0x1f]
      %vm81 = vcmask 1044480
      %v82 = vsel %vm81, %v80, 0.0
      %v83 = vadd.f32 %v79, %v82
      %84 = vadd.xlane.f32.xlu0 %v83
      %v85 = vpop.xlane.xlu0 %84
      %v86 = vrot.slane %v85, 4
      %v87 = vadd.f32 %v85, %v86
      %v88 = vrot.slane %v87, 2
      %v89 = vadd.f32 %v87, %v88
      %v90 = vrot.slane %v89, 1
      %v91 = vadd.f32 %v89, %v90
      %s92 = vtos %v91
      %v93 = vstv %s92
      %94 = vst [vmem:[#allocation8] sm:$0x1] %v93
    $region25: #{tpu_custom_call.1} parent=1 // pred_fallthru
      _
    // Predicated region
    $region26: #{tpu_custom_call.1} parent=1 // pred_check
      _
    $region27: #{tpu_custom_call.1} parent=1 // pred_check_branch
      %96 = sbr.rel (0) target = $region29
    $region28: #{tpu_custom_call.1} parent=1 // pred_region
      %s98 = ssub.s32 16, 16
      %99 = vsyncadd [#allocation5], %s98
      %s101 = sshll.u32 [#allocation8], 4
      %s102 = int_to_ptr.vmem [resolvable:$true] %s101
      %104 = dma.vmem_to_hbm [thread:$0]  %s102, 16, %s2, [#allocation5]
    $region29: #{tpu_custom_call.1} parent=1 // pred_fallthru
      _
    // Predicated region
    $region30: #{tpu_custom_call.1} parent=1 // pred_check
      _
    $region31: #{tpu_custom_call.1} parent=1 // pred_check_branch
      %106 = sbr.rel (0) target = $region33
    $region32: #{tpu_custom_call.1} parent=1 // pred_region
      %107 = dma.done [#allocation5], 16
    $region33: #{tpu_custom_call.1} parent=1 // pred_fallthru
      _
    %108 = vsyncpa [#allocation4], 1
    %109 = vsyncpa [#allocation7], 1
    %110 = vsyncpa [#allocation5], 1

</llo_original>
